<compile_context>
chip_gen: v7x
topology: tpu7x:2x2x1
jax: 0.10.0
libtpu: 0.0.40
codegen_flags: <defaults>
</compile_context>

<pallas_src>
import jax
import jax.numpy as jnp
from jax.experimental import pallas as pl
from jax.experimental.pallas import tpu as pltpu


PIVOT_PAD = 128   # lane-dense padded width for the fc / verbalizer heads


# ----------------------------- Pallas kernels -----------------------------

def _fused_plm_kernel(x_ref, prompt_ref, w1_ref, b1_ref, w2_ref, b2_ref,
                      fcw_ref, fcb_ref, hid_ref, fc_ref):
    """Fused prologue(add soft prompt) -> PLM MLP -> hidden + fc epilogue.

    Block shapes (per grid point (path, batch_tile)):
      x_ref      (TM, H)        bf16   activation tile (shared by both paths)
      prompt_ref (TM, H)        bf16   per-path soft prompt (tiled over TM rows)
      w1/w2      (H, H)         bf16   resident PLM weights
      b1/b2      (1, H)         f32
      fcw        (H, PIVOT_PAD) bf16   padded fc head
      fcb        (1, PIVOT_PAD) f32
      hid_ref    (TM, H)        bf16   hidden-state writeback
      fc_ref     (TM, PIVOT_PAD) f32   lane-dense padded pivot logits
    """
    # Prologue: template soft-prompt add (VPU filler under the MXU matmuls).
    xb = x_ref[...] + prompt_ref[...]                                   # bf16
    h = jnp.dot(xb, w1_ref[...], preferred_element_type=jnp.float32)
    h = jax.nn.gelu(h + b1_ref[...])                                    # f32
    o = jnp.dot(h.astype(jnp.bfloat16), w2_ref[...],
                preferred_element_type=jnp.float32) + b2_ref[...]       # f32
    hid_ref[...] = o.astype(hid_ref.dtype)                              # bf16 writeback
    # fc epilogue (pivot head), padded to 128 lanes -> unmasked vst stores.
    fc_ref[...] = jnp.dot(o.astype(jnp.bfloat16), fcw_ref[...],
                          preferred_element_type=jnp.float32) + fcb_ref[...]


def _verbalizer_kernel(hm_ref, hs_ref, wl_ref, wi_ref, bl_ref, bi_ref,
                       ol_ref, oi_ref):
    """Tiny verbalizer heads on the <mask>-row hidden states only.

    hm/hs: (B, H) bf16; wl/wi: (H, PIVOT_PAD) bf16; bl/bi: (1, PIVOT_PAD) f32.
    """
    ol_ref[...] = jnp.dot(hm_ref[...], wl_ref[...],
                          preferred_element_type=jnp.float32) + bl_ref[...]
    oi_ref[...] = jnp.dot(hs_ref[...], wi_ref[...],
                          preferred_element_type=jnp.float32) + bi_ref[...]


# ----------------------------- Pallas wrappers -----------------------------

def _pick_batch_tile(batch, seq, target_rows=1024):
    """Largest divisor of `batch` whose row-tile (tb*seq) is sublane-aligned."""
    cap = max(1, target_rows // max(seq, 1))
    for d in range(min(batch, cap), 0, -1):
        if batch % d == 0 and (d * seq) % 8 == 0:
            return d
    return batch   # full-extent block is always legal


def fused_plm(x_flat, prompts_tiled, w1, b1, w2, b2, fcw, fcb, *, tm):
    """x_flat: [M, H] bf16; prompts_tiled: [2, TM, H] bf16 (TM = tm rows)."""
    m, h = x_flat.shape
    n_path = prompts_tiled.shape[0]
    grid = (n_path, m // tm)
    return pl.pallas_call(
        _fused_plm_kernel,
        out_shape=(
            jax.ShapeDtypeStruct((n_path, m, h), jnp.bfloat16),     # hidden
            jax.ShapeDtypeStruct((n_path, m, PIVOT_PAD), jnp.float32),  # fc (padded)
        ),
        grid=grid,
        in_specs=[
            pl.BlockSpec((tm, h), lambda p, b: (b, 0)),             # x tile
            pl.BlockSpec((None, tm, h), lambda p, b: (p, 0, 0)),    # per-path prompt
            pl.BlockSpec((h, h), lambda p, b: (0, 0)),              # w1 resident
            pl.BlockSpec((1, h), lambda p, b: (0, 0)),              # b1
            pl.BlockSpec((h, h), lambda p, b: (0, 0)),              # w2 resident
            pl.BlockSpec((1, h), lambda p, b: (0, 0)),              # b2
            pl.BlockSpec((h, PIVOT_PAD), lambda p, b: (0, 0)),      # fc weight (padded)
            pl.BlockSpec((1, PIVOT_PAD), lambda p, b: (0, 0)),      # fc bias (padded)
        ],
        out_specs=(
            pl.BlockSpec((None, tm, h), lambda p, b: (p, b, 0)),
            pl.BlockSpec((None, tm, PIVOT_PAD), lambda p, b: (p, b, 0)),
        ),
        compiler_params=pltpu.CompilerParams(
            dimension_semantics=("parallel", "parallel")),
    )(x_flat, prompts_tiled, w1, b1, w2, b2, fcw, fcb)


def verbalizer_heads(h_main, h_share, w_label, w_issue, b_label, b_issue):
    b, _ = h_main.shape
    full = lambda s: pl.BlockSpec(s, lambda: tuple(0 for _ in s))
    out = jax.ShapeDtypeStruct((b, PIVOT_PAD), jnp.float32)
    return pl.pallas_call(
        _verbalizer_kernel,
        out_shape=(out, out),
        in_specs=[full(h_main.shape), full(h_share.shape),
                  full(w_label.shape), full(w_issue.shape),
                  full(b_label.shape), full(b_issue.shape)],
        out_specs=(full((b, PIVOT_PAD)), full((b, PIVOT_PAD))),
    )(h_main, h_share, w_label, w_issue, b_label, b_issue)


# ----------------------------- Model definition -----------------------------

def init_params(key, hidden_size, vocab_size, pivot_num, seq_len, issue_names):
    ks = jax.random.split(key, 6 + len(issue_names))

    def xavier(k, fan_in, fan_out):
        lim = jnp.sqrt(6.0 / (fan_in + fan_out))
        return jax.random.uniform(k, (fan_in, fan_out), jnp.float32, -lim, lim)

    templates = {
        name: 0.02 * jax.random.normal(ks[i], (seq_len, hidden_size), jnp.float32)
        for i, name in enumerate(issue_names)
    }
    i0 = len(issue_names)
    return {
        # per-issue + shared learned soft prompts ([S, H])
        "templates": templates,
        "template_share": 0.02 * jax.random.normal(
            ks[i0], (seq_len, hidden_size), jnp.float32),
        # synthetic PLM (2-layer MLP)
        "plm_w1": xavier(ks[i0 + 1], hidden_size, hidden_size),
        "plm_b1": jnp.zeros((1, hidden_size), jnp.float32),
        "plm_w2": xavier(ks[i0 + 2], hidden_size, hidden_size),
        "plm_b2": jnp.zeros((1, hidden_size), jnp.float32),
        # MLM vocab head used by the verbalizers
        "vocab_w": xavier(ks[i0 + 3], hidden_size, vocab_size),
        "vocab_b": jnp.zeros((1, vocab_size), jnp.float32),
        # self.fc = nn.Linear(hidden_size, pivot_num), xavier_uniform + zero bias
        "fc_w": xavier(ks[i0 + 4], hidden_size, pivot_num),
        "fc_b": jnp.zeros((1, pivot_num), jnp.float32),
        # verbalizer label-word / issue-word token ids (columns of vocab head)
        "label_word_ids": jnp.array([3, 17, 42], jnp.int32),
        "issue_word_ids": jnp.array([5, 29], jnp.int32),
    }


def _pad_cols(a, width):
    return jnp.pad(a, ((0, 0), (0, width - a.shape[1])))


def joint_mlm_forward(params, batch, issue, alpha, train=True):
    x = batch["inputs_embeds"]                      # [B, S, H]
    loss_ids = batch["loss_ids"]                    # [B, S]
    B, S, H = x.shape
    M = B * S

    # template_<issue>.process_batch / template_share.process_batch (diff=True)
    soft_issue = params["templates"][issue]         # per-issue template
    soft_share = params["template_share"]
    out1, out2 = soft_issue, soft_share             # "diff" outputs of process_batch

    # path 0 (merged):  ((x+soft_issue) + (x+soft_share)) / 2 == x + (soft_issue+soft_share)/2
    # path 1 (share) :  ReverseLayerF(x + soft_share)  -> identity in forward
    # TODO(synk): ReverseLayerF only scales gradients by -alpha in backward; not modeled here.
    prompt_merged = (soft_issue + soft_share) * 0.5
    prompts = jnp.stack([prompt_merged, soft_share], axis=0)            # [2, S, H]

    tb = _pick_batch_tile(B, S)
    tm = tb * S                                                         # rows per tile
    x_flat = x.reshape(M, H).astype(jnp.bfloat16)
    prompts_tiled = jnp.tile(prompts, (1, tb, 1)).astype(jnp.bfloat16)  # [2, TM, H]

    fcw = _pad_cols(params["fc_w"], PIVOT_PAD).astype(jnp.bfloat16)     # [H, 128]
    fcb = _pad_cols(params["fc_b"], PIVOT_PAD)                          # [1, 128]

    # One fused pallas_call: soft-prompt add + PLM for BOTH paths + fc epilogue.
    hid, fc_pad = fused_plm(
        x_flat, prompts_tiled,
        params["plm_w1"].astype(jnp.bfloat16), params["plm_b1"],
        params["plm_w2"].astype(jnp.bfloat16), params["plm_b2"],
        fcw, fcb, tm=tm)
    # hid: [2, M, H] bf16;  fc_pad: [2, M, PIVOT_PAD] f32

    # extract_at_mask BEFORE the vocab projection: pick the one <mask> row per
    # example.  Precondition (as in the torch reference): exactly one loss_id>0
    # per row; argmax silently picks position 0 otherwise.
    pos = jnp.argmax(loss_ids, axis=1)                                  # [B]
    flat_idx = jnp.arange(B) * S + pos                                  # [B]
    h_main = hid[0][flat_idx]                                           # [B, H] bf16
    h_share = hid[1][flat_idx]                                          # [B, H] bf16

    # verbalizer.gather_outputs: project only label/issue word columns (padded
    # to 128 lanes for lane-dense stores) instead of the full [M, V] vocab.
    w_label = _pad_cols(params["vocab_w"][:, params["label_word_ids"]],
                        PIVOT_PAD).astype(jnp.bfloat16)
    b_label = _pad_cols(params["vocab_b"][:, params["label_word_ids"]], PIVOT_PAD)
    w_issue = _pad_cols(params["vocab_w"][:, params["issue_word_ids"]],
                        PIVOT_PAD).astype(jnp.bfloat16)
    b_issue = _pad_cols(params["vocab_b"][:, params["issue_word_ids"]], PIVOT_PAD)

    ol_pad, oi_pad = verbalizer_heads(h_main, h_share, w_label, w_issue,
                                      b_label, b_issue)                 # [B, 128] each

    n_label = int(params["label_word_ids"].shape[0])
    n_issue = int(params["issue_word_ids"].shape[0])
    # verbalizer_label.process_outputs: normalize over label words
    label_words_logits = jax.nn.log_softmax(ol_pad[:, :n_label], axis=-1)
    # TODO(synk): verbalizer_issue.process_logits2 calibration undefined in reference.
    issue_logits = oi_pad[:, :n_issue]

    mlm_logits = None
    if train:
        pivot = params["fc_b"].shape[-1]
        mlm_logits = fc_pad[1][:, :pivot]                               # [M, pivot] == view(-1, pivot)

    return (label_words_logits, issue_logits, mlm_logits, out1, out2)


# ----------------------------- Demo -----------------------------

if __name__ == "__main__":
    B, S, H = 4, 16, 128
    VOCAB, PIVOT = 512, 4
    ISSUES = ("economy", "health")

    key = jax.random.PRNGKey(0)
    k_param, k_x = jax.random.split(key)
    params = init_params(k_param, H, VOCAB, PIVOT, S, ISSUES)

    inputs_embeds = jax.random.normal(k_x, (B, S, H), jnp.float32)
    mask_pos = jnp.array([3, 7, 1, 5], jnp.int32)                # one <mask> per example
    loss_ids = jnp.zeros((B, S), jnp.int32).at[jnp.arange(B), mask_pos].set(1)

    batch = {"inputs_embeds": inputs_embeds, "loss_ids": loss_ids}

    outs = joint_mlm_forward(params, batch, issue="economy", alpha=0.5, train=True)
    outs = jax.block_until_ready(outs)

    label_words_logits, issue_logits, mlm_logits, out1, out2 = outs
    assert label_words_logits.shape == (B, 3)
    assert issue_logits.shape == (B, 2)
    assert mlm_logits.shape == (B * S, PIVOT)
    assert out1.shape == (S, H) and out2.shape == (S, H)
    assert bool(jnp.all(jnp.isfinite(label_words_logits)))
    assert bool(jnp.all(jnp.isfinite(mlm_logits)))
    print("KERNEL_OK")
</pallas_src>

<mosaic_0001>
module attributes {stable_mosaic.version = 11 : i64} {
  func.func @_fused_plm_kernel(%arg0: i32, %arg1: i32, %arg2: memref<64x128xbf16, #tpu.memory_space<vmem>>, %arg3: memref<1x64x128xbf16, #tpu.memory_space<vmem>>, %arg4: memref<128x128xbf16, #tpu.memory_space<vmem>>, %arg5: memref<1x128xf32, #tpu.memory_space<vmem>>, %arg6: memref<128x128xbf16, #tpu.memory_space<vmem>>, %arg7: memref<1x128xf32, #tpu.memory_space<vmem>>, %arg8: memref<128x128xbf16, #tpu.memory_space<vmem>>, %arg9: memref<1x128xf32, #tpu.memory_space<vmem>>, %arg10: memref<1x64x128xbf16, #tpu.memory_space<vmem>>, %arg11: memref<1x64x128xf32, #tpu.memory_space<vmem>>) attributes {dimension_semantics = [#tpu.dimension_semantics<parallel>, #tpu.dimension_semantics<parallel>], iteration_bounds = array<i64: 2, 1>, scalar_prefetch = 0 : i64, scratch_operands = 0 : i64, tpu.core_type = #tpu.core_type<tc>, window_params = [{transform_indices = @transform_0, window_bounds = array<i64: 64, 128>}, {transform_indices = @transform_1, window_bounds = array<i64: 1, 64, 128>}, {pipeline_mode = #tpu.pipeline_mode<synchronous>, transform_indices = @transform_2, window_bounds = array<i64: 128, 128>}, {pipeline_mode = #tpu.pipeline_mode<synchronous>, transform_indices = @transform_3, window_bounds = array<i64: 1, 128>}, {pipeline_mode = #tpu.pipeline_mode<synchronous>, transform_indices = @transform_4, window_bounds = array<i64: 128, 128>}, {pipeline_mode = #tpu.pipeline_mode<synchronous>, transform_indices = @transform_5, window_bounds = array<i64: 1, 128>}, {pipeline_mode = #tpu.pipeline_mode<synchronous>, transform_indices = @transform_6, window_bounds = array<i64: 128, 128>}, {pipeline_mode = #tpu.pipeline_mode<synchronous>, transform_indices = @transform_7, window_bounds = array<i64: 1, 128>}, {transform_indices = @transform_8, window_bounds = array<i64: 1, 64, 128>}, {transform_indices = @transform_9, window_bounds = array<i64: 1, 64, 128>}]} {
    %c0 = arith.constant 0 : index
    %c0_0 = arith.constant 0 : index
    %0 = vector.load %arg2[%c0, %c0_0] : memref<64x128xbf16, #tpu.memory_space<vmem>>, vector<64x128xbf16>
    %c0_1 = arith.constant 0 : index
    %c0_2 = arith.constant 0 : index
    %c0_3 = arith.constant 0 : index
    %1 = vector.load %arg3[%c0_1, %c0_2, %c0_3] : memref<1x64x128xbf16, #tpu.memory_space<vmem>>, vector<1x64x128xbf16>
    %2 = vector.shape_cast %1 : vector<1x64x128xbf16> to vector<64x128xbf16>
    %3 = arith.addf %0, %2 : vector<64x128xbf16>
    %c0_4 = arith.constant 0 : index
    %c0_5 = arith.constant 0 : index
    %4 = vector.load %arg4[%c0_4, %c0_5] : memref<128x128xbf16, #tpu.memory_space<vmem>>, vector<128x128xbf16>
    %cst = arith.constant dense<0.000000e+00> : vector<64x128xf32>
    %5 = tpu.matmul %3, %4, %cst {dimension_numbers = #tpu.dot_dimension_numbers<[1], [0], [0], [1], [0, 0, 1, 1], [], []>} : vector<64x128xbf16>, vector<128x128xbf16>, vector<64x128xf32> -> vector<64x128xf32>
    %c0_6 = arith.constant 0 : index
    %c0_7 = arith.constant 0 : index
    %6 = vector.load %arg5[%c0_6, %c0_7] : memref<1x128xf32, #tpu.memory_space<vmem>>, vector<1x128xf32>
    %7 = vector.broadcast %6 : vector<1x128xf32> to vector<64x128xf32>
    %8 = arith.addf %5, %7 : vector<64x128xf32>
    %9 = arith.mulf %8, %8 : vector<64x128xf32>
    %10 = arith.mulf %8, %9 : vector<64x128xf32>
    %cst_8 = arith.constant 4.471500e-02 : f32
    %11 = vector.broadcast %cst_8 : f32 to vector<64x128xf32>
    %12 = arith.mulf %11, %10 : vector<64x128xf32>
    %13 = arith.addf %8, %12 : vector<64x128xf32>
    %cst_9 = arith.constant 0.797884583 : f32
    %14 = vector.broadcast %cst_9 : f32 to vector<64x128xf32>
    %15 = arith.mulf %14, %13 : vector<64x128xf32>
    %16 = math.tanh %15 : vector<64x128xf32>
    %cst_10 = arith.constant 1.000000e+00 : f32
    %17 = vector.broadcast %cst_10 : f32 to vector<64x128xf32>
    %18 = arith.addf %17, %16 : vector<64x128xf32>
    %cst_11 = arith.constant 5.000000e-01 : f32
    %19 = vector.broadcast %cst_11 : f32 to vector<64x128xf32>
    %20 = arith.mulf %19, %18 : vector<64x128xf32>
    %21 = arith.mulf %8, %20 : vector<64x128xf32>
    %22 = arith.truncf %21 : vector<64x128xf32> to vector<64x128xbf16>
    %c0_12 = arith.constant 0 : index
    %c0_13 = arith.constant 0 : index
    %23 = vector.load %arg6[%c0_12, %c0_13] : memref<128x128xbf16, #tpu.memory_space<vmem>>, vector<128x128xbf16>
    %cst_14 = arith.constant dense<0.000000e+00> : vector<64x128xf32>
    %24 = tpu.matmul %22, %23, %cst_14 {dimension_numbers = #tpu.dot_dimension_numbers<[1], [0], [0], [1], [0, 0, 1, 1], [], []>} : vector<64x128xbf16>, vector<128x128xbf16>, vector<64x128xf32> -> vector<64x128xf32>
    %c0_15 = arith.constant 0 : index
    %c0_16 = arith.constant 0 : index
    %25 = vector.load %arg7[%c0_15, %c0_16] : memref<1x128xf32, #tpu.memory_space<vmem>>, vector<1x128xf32>
    %26 = vector.broadcast %25 : vector<1x128xf32> to vector<64x128xf32>
    %27 = arith.addf %24, %26 : vector<64x128xf32>
    %28 = arith.truncf %27 : vector<64x128xf32> to vector<64x128xbf16>
    %c0_17 = arith.constant 0 : index
    %c0_18 = arith.constant 0 : index
    %c0_19 = arith.constant 0 : index
    %29 = vector.load %arg10[%c0_17, %c0_18, %c0_19] : memref<1x64x128xbf16, #tpu.memory_space<vmem>>, vector<1x64x128xbf16>
    %30 = vector.shape_cast %29 : vector<1x64x128xbf16> to vector<64x128xbf16>
    %31 = vector.shape_cast %28 : vector<64x128xbf16> to vector<1x64x128xbf16>
    tpu.vector_store %arg10[%c0_17, %c0_18, %c0_19], %31 {strides = array<i32>} : memref<1x64x128xbf16, #tpu.memory_space<vmem>>, vector<1x64x128xbf16>,
    %32 = arith.truncf %27 : vector<64x128xf32> to vector<64x128xbf16>
    %c0_20 = arith.constant 0 : index
    %c0_21 = arith.constant 0 : index
    %33 = vector.load %arg8[%c0_20, %c0_21] : memref<128x128xbf16, #tpu.memory_space<vmem>>, vector<128x128xbf16>
    %cst_22 = arith.constant dense<0.000000e+00> : vector<64x128xf32>
    %34 = tpu.matmul %32, %33, %cst_22 {dimension_numbers = #tpu.dot_dimension_numbers<[1], [0], [0], [1], [0, 0, 1, 1], [], []>} : vector<64x128xbf16>, vector<128x128xbf16>, vector<64x128xf32> -> vector<64x128xf32>
    %c0_23 = arith.constant 0 : index
    %c0_24 = arith.constant 0 : index
    %35 = vector.load %arg9[%c0_23, %c0_24] : memref<1x128xf32, #tpu.memory_space<vmem>>, vector<1x128xf32>
    %36 = vector.broadcast %35 : vector<1x128xf32> to vector<64x128xf32>
    %37 = arith.addf %34, %36 : vector<64x128xf32>
    %c0_25 = arith.constant 0 : index
    %c0_26 = arith.constant 0 : index
    %c0_27 = arith.constant 0 : index
    %38 = vector.load %arg11[%c0_25, %c0_26, %c0_27] : memref<1x64x128xf32, #tpu.memory_space<vmem>>, vector<1x64x128xf32>
    %39 = vector.shape_cast %38 : vector<1x64x128xf32> to vector<64x128xf32>
    %40 = vector.shape_cast %37 : vector<64x128xf32> to vector<1x64x128xf32>
    tpu.vector_store %arg11[%c0_25, %c0_26, %c0_27], %40 {strides = array<i32>} : memref<1x64x128xf32, #tpu.memory_space<vmem>>, vector<1x64x128xf32>,
    return
  }
  func.func @transform_0(%arg0: i32, %arg1: i32) -> (i32, i32) {
    %c0_i32 = arith.constant 0 : i32
    %c0_i32_0 = arith.constant 0 : i32
    return %arg1, %c0_i32 : i32, i32
  }
  func.func @transform_1(%arg0: i32, %arg1: i32) -> (i32, i32, i32) {
    %c0_i32 = arith.constant 0 : i32
    %c0_i32_0 = arith.constant 0 : i32
    %c0_i32_1 = arith.constant 0 : i32
    return %arg0, %c0_i32, %c0_i32_0 : i32, i32, i32
  }
  func.func @transform_2(%arg0: i32, %arg1: i32) -> (i32, i32) {
    %c0_i32 = arith.constant 0 : i32
    %c0_i32_0 = arith.constant 0 : i32
    %c0_i32_1 = arith.constant 0 : i32
    return %c0_i32, %c0_i32_0 : i32, i32
  }
  func.func @transform_3(%arg0: i32, %arg1: i32) -> (i32, i32) {
    %c0_i32 = arith.constant 0 : i32
    %c0_i32_0 = arith.constant 0 : i32
    %c0_i32_1 = arith.constant 0 : i32
    return %c0_i32, %c0_i32_0 : i32, i32
  }
  func.func @transform_4(%arg0: i32, %arg1: i32) -> (i32, i32) {
    %c0_i32 = arith.constant 0 : i32
    %c0_i32_0 = arith.constant 0 : i32
    %c0_i32_1 = arith.constant 0 : i32
    return %c0_i32, %c0_i32_0 : i32, i32
  }
  func.func @transform_5(%arg0: i32, %arg1: i32) -> (i32, i32) {
    %c0_i32 = arith.constant 0 : i32
    %c0_i32_0 = arith.constant 0 : i32
    %c0_i32_1 = arith.constant 0 : i32
    return %c0_i32, %c0_i32_0 : i32, i32
  }
  func.func @transform_6(%arg0: i32, %arg1: i32) -> (i32, i32) {
    %c0_i32 = arith.constant 0 : i32
    %c0_i32_0 = arith.constant 0 : i32
    %c0_i32_1 = arith.constant 0 : i32
    return %c0_i32, %c0_i32_0 : i32, i32
  }
  func.func @transform_7(%arg0: i32, %arg1: i32) -> (i32, i32) {
    %c0_i32 = arith.constant 0 : i32
    %c0_i32_0 = arith.constant 0 : i32
    %c0_i32_1 = arith.constant 0 : i32
    return %c0_i32, %c0_i32_0 : i32, i32
  }
  func.func @transform_8(%arg0: i32, %arg1: i32) -> (i32, i32, i32) {
    %c0_i32 = arith.constant 0 : i32
    %c0_i32_0 = arith.constant 0 : i32
    return %arg0, %arg1, %c0_i32 : i32, i32, i32
  }
  func.func @transform_9(%arg0: i32, %arg1: i32) -> (i32, i32, i32) {
    %c0_i32 = arith.constant 0 : i32
    %c0_i32_0 = arith.constant 0 : i32
    return %arg0, %arg1, %c0_i32 : i32, i32, i32
  }
}

</mosaic_0001>

<llo_original>
// kernel: tpu_custom_call.1
$region0: #{tpu_custom_call.1}
  #allocation0 [shape = 'u32[]', space=smem, size = 0x4, offset = 0x4, fixed_abs, tag = 'smem constant byte address 0x4 - core index']
  #allocation1 [shape = 'u32[144,128]{1,0:T(1,128)}', space=vmem, size = 0x12000, scoped, tag = 'internal scratch']
  %s0 = inlined_call_operand.hbm [shape: bf16[64,128], index: 0, kind: input, shape index: {}]
  %s1 = inlined_call_operand.hbm [shape: bf16[2,64,128], index: 1, kind: input, shape index: {}]
  %s2 = inlined_call_operand.hbm [shape: bf16[128,128], index: 2, kind: input, shape index: {}]
  %s3 = inlined_call_operand.vmem [shape: f32[1,128], index: 3, kind: input, shape index: {}]
  %s4 = inlined_call_operand.hbm [shape: bf16[128,128], index: 4, kind: input, shape index: {}]
  %s5 = inlined_call_operand.vmem [shape: f32[1,128], index: 5, kind: input, shape index: {}]
  %s6 = inlined_call_operand.hbm [shape: bf16[128,128], index: 6, kind: input, shape index: {}]
  %s7 = inlined_call_operand.vmem [shape: f32[1,128], index: 7, kind: input, shape index: {}]
  %s8 = inlined_call_operand.hbm [shape: bf16[2,64,128], index: 8, kind: output, shape index: {0}]
  %s9 = inlined_call_operand.hbm [shape: f32[2,64,128], index: 9, kind: output, shape index: {1}]
  %10 = xla_tuple %s8, %s9
  %s11 = sld [smem:[#allocation0]]
  $region93: #{tpu_custom_call.1} parent=0
    _
  %s13 = ssub.s32 1, %s11
  %s14 = scalar_select 0, %s13, %s11
  $region1: #{tpu_custom_call.1} parent=0
    #allocation2 [shape = 'u8[16384]{0}', space=vmem, size = 0x4000, scoped, tag = 'input window, operand 0, single buffered']
    #allocation3 [shape = 's32[2]{0}', space=sflag, size = 0x8, scoped, tag = 'scoped memory for tpu_custom_call.1']
    #allocation4 [shape = 's32[2]{0}', space=sflag, size = 0x8, scoped, tag = 'scoped memory for tpu_custom_call.1']
    #allocation5 [shape = 'u8[32768]{0}', space=vmem, size = 0x8000, scoped, tag = 'input window, operand 1']
    #allocation6 [shape = 's32[2]{0}', space=sflag, size = 0x8, scoped, tag = 'scoped memory for tpu_custom_call.1']
    #allocation7 [shape = 'u8[32768]{0}', space=vmem, size = 0x8000, scoped, tag = 'input window, operand 2, single buffered']
    #allocation8 [shape = 'u8[32768]{0}', space=vmem, size = 0x8000, scoped, tag = 'input window, operand 4, single buffered']
    #allocation9 [shape = 's32[1]{0}', space=sflag, size = 0x4, scoped, tag = 'scoped memory for tpu_custom_call.1']
    #allocation10 [shape = 'u8[32768]{0}', space=vmem, size = 0x8000, scoped, tag = 'input window, operand 6, single buffered']
    #allocation11 [shape = 'u8[32768]{0}', space=vmem, size = 0x8000, scoped, tag = 'output window, operand 0']
    #allocation12 [shape = 'u8[65536]{0}', space=vmem, size = 0x10000, scoped, tag = 'output window, operand 1']
    #allocation13 [shape = 's32[2]{0}', space=sflag, size = 0x8, scoped, tag = 'scoped memory for tpu_custom_call.1']
    %15 = vsyncpa [#allocation3], 0
    %16 = vsyncpa [#allocation6], 0
    %s17 = scalar_lea.sflag [#allocation6], 1
    %18 = vsyncpa %s17, 0
    %19 = vsyncpa [#allocation9], 0
    %20 = vsyncpa [#allocation4], 0
    %s21 = scalar_lea.sflag [#allocation4], 1
    %22 = vsyncpa %s21, 0
    %23 = vsyncpa [#allocation13], 0
    %s24 = scalar_lea.sflag [#allocation13], 1
    %25 = vsyncpa %s24, 0
    loop: start=0, step=1, limit=4
    $region2: #{tpu_custom_call.1} parent=1 // loop_pre_header
      _
    $region3: #{tpu_custom_call.1} parent=1 // loop_header
      %s27 = sphi 0, %s31
      %p28 = scmp.ge.s32.totalorder %s27, 4
      %s34 = sphi 0, %s46
      %s35 = sphi 0, %s42
      %s36 = sphi 0, %s34
      %s37 = sphi 0, %s35
      %s38 = sphi 0, %s36
      %s39 = sphi 0, %s37
      %s49 = sphi 0, %s51
      %s52 = sphi 0, %s49
      %s53 = sphi 0, %s52
      %s69 = sphi 0, %s53
      %s75 = sphi 0, %s77
      %s78 = sphi 0, %s75
      %s79 = sphi 0, %s78
      %s95 = sphi 0, %s79
      %s99 = sphi 0, %s99
      %s101 = sphi 0, %s99
      %s102 = sphi 0, %s101
      %s116 = sphi 0, %s102
      %s120 = sphi 0, %s120
      %s122 = sphi 0, %s120
      %s123 = sphi 0, %s122
      %s137 = sphi 0, %s123
      %s141 = sphi 0, %s141
      %s143 = sphi 0, %s141
      %s144 = sphi 0, %s143
      %s158 = sphi 0, %s144
      %s162 = sphi 0, %s162
      %s164 = sphi 0, %s162
      %s165 = sphi 0, %s164
      %s179 = sphi 0, %s165
      %s183 = sphi 0, %s183
      %s185 = sphi 0, %s183
      %s186 = sphi 0, %s185
      %s200 = sphi 0, %s186
      %s204 = sphi 0, %s204
      %s206 = sphi 0, %s204
      %s207 = sphi 0, %s206
      %s221 = sphi 0, %s207
      %s229 = sphi 0, %s231
      %s232 = sphi 0, %s229
      %s233 = sphi 0, %s232
      %s249 = sphi 0, %s233
      %s257 = sphi 0, %s259
      %s260 = sphi 0, %s257
      %s261 = sphi 0, %s260
      %s277 = sphi 0, %s261
    $region4: #{tpu_custom_call.1} parent=1 // loop_header_branch
      %30 = sbr.rel (%p28) target = $region8
    $region5: #{tpu_custom_call.1} parent=1 // loop_body
      %s32 = ssub.s32 %s27, 1
      %s33 = ssub.s32 %s27, 2
      %s40 = sadd.s32 1, %s35
      %p41 = scmp.ge.s32.totalorder %s40, 1
      %s42 = scalar_select %p41, 0, %s40
      %s43 = sadd.s32 1, %s34
      %s44 = scalar_select %p41, %s43, %s34
      %p45 = scmp.ge.s32.totalorder %s44, 2
      %s46 = scalar_select %p45, 0, %s44
      %s47 = ssub.s32 %s35, %s42
      %p48 = scmp.eq.s32.totalorder %s47, 0
      %s50 = sadd.s32 %s49, 1
      %s51 = scalar_select %p48, %s49, %s50
      %p54 = pneg %p48
      %p55 = scmp.eq.s32.totalorder %s27, 1
      %p56 = por %p54, %p55
      %p57 = scmp.ne.s32.totalorder %s49, %s52
      %p58 = scmp.eq.s32.totalorder %s27, 0
      %p59 = por %p57, %p58
      %p60 = scmp.ne.s32.totalorder %s49, %s52
      %p61 = scmp.eq.s32.totalorder %s32, 1
      %p62 = por %p60, %p61
      %p63 = scmp.ne.s32.totalorder %s52, %s53
      %p64 = scmp.eq.s32.totalorder %s32, 0
      %p65 = por %p63, %p64
      %p66 = scmp.ne.s32.totalorder %s52, %s53
      %p67 = scmp.eq.s32.totalorder %s33, 1
      %p68 = por %p66, %p67
      %p70 = scmp.ne.s32.totalorder %s53, %s69
      %p71 = scmp.eq.s32.totalorder %s33, 0
      %p72 = por %p70, %p71
      %s73 = ssub.s32 %s34, %s46
      %p74 = scmp.eq.s32.totalorder %s73, 0
      %s76 = sadd.s32 %s75, 1
      %s77 = scalar_select %p74, %s75, %s76
      %p80 = pneg %p74
      %p81 = scmp.eq.s32.totalorder %s27, 1
      %p82 = por %p80, %p81
      %p83 = scmp.ne.s32.totalorder %s75, %s78
      %p84 = scmp.eq.s32.totalorder %s27, 0
      %p85 = por %p83, %p84
      %p86 = scmp.ne.s32.totalorder %s75, %s78
      %p87 = scmp.eq.s32.totalorder %s32, 1
      %p88 = por %p86, %p87
      %p89 = scmp.ne.s32.totalorder %s78, %s79
      %p90 = scmp.eq.s32.totalorder %s32, 0
      %p91 = por %p89, %p90
      %p92 = scmp.ne.s32.totalorder %s78, %s79
      %p93 = scmp.eq.s32.totalorder %s33, 1
      %p94 = por %p92, %p93
      %p96 = scmp.ne.s32.totalorder %s79, %s95
      %p97 = scmp.eq.s32.totalorder %s33, 0
      %p98 = por %p96, %p97
      %s100 = sadd.s32 %s99, 1
      %p103 = scmp.eq.s32.totalorder %s27, 1
      %p104 = scmp.ne.s32.totalorder %s99, %s101
      %p105 = scmp.eq.s32.totalorder %s27, 0
      %p106 = por %p104, %p105
      %p107 = scmp.ne.s32.totalorder %s99, %s101
      %p108 = scmp.eq.s32.totalorder %s32, 1
      %p109 = por %p107, %p108
      %p110 = scmp.ne.s32.totalorder %s101, %s102
      %p111 = scmp.eq.s32.totalorder %s32, 0
      %p112 = por %p110, %p111
      %p113 = scmp.ne.s32.totalorder %s101, %s102
      %p114 = scmp.eq.s32.totalorder %s33, 1
      %p115 = por %p113, %p114
      %p117 = scmp.ne.s32.totalorder %s102, %s116
      %p118 = scmp.eq.s32.totalorder %s33, 0
      %p119 = por %p117, %p118
      %s121 = sadd.s32 %s120, 1
      %p124 = scmp.eq.s32.totalorder %s27, 1
      %p125 = scmp.ne.s32.totalorder %s120, %s122
      %p126 = scmp.eq.s32.totalorder %s27, 0
      %p127 = por %p125, %p126
      %p128 = scmp.ne.s32.totalorder %s120, %s122
      %p129 = scmp.eq.s32.totalorder %s32, 1
      %p130 = por %p128, %p129
      %p131 = scmp.ne.s32.totalorder %s122, %s123
      %p132 = scmp.eq.s32.totalorder %s32, 0
      %p133 = por %p131, %p132
      %p134 = scmp.ne.s32.totalorder %s122, %s123
      %p135 = scmp.eq.s32.totalorder %s33, 1
      %p136 = por %p134, %p135
      %p138 = scmp.ne.s32.totalorder %s123, %s137
      %p139 = scmp.eq.s32.totalorder %s33, 0
      %p140 = por %p138, %p139
      %s142 = sadd.s32 %s141, 1
      %p145 = scmp.eq.s32.totalorder %s27, 1
      %p146 = scmp.ne.s32.totalorder %s141, %s143
      %p147 = scmp.eq.s32.totalorder %s27, 0
      %p148 = por %p146, %p147
      %p149 = scmp.ne.s32.totalorder %s141, %s143
      %p150 = scmp.eq.s32.totalorder %s32, 1
      %p151 = por %p149, %p150
      %p152 = scmp.ne.s32.totalorder %s143, %s144
      %p153 = scmp.eq.s32.totalorder %s32, 0
      %p154 = por %p152, %p153
      %p155 = scmp.ne.s32.totalorder %s143, %s144
      %p156 = scmp.eq.s32.totalorder %s33, 1
      %p157 = por %p155, %p156
      %p159 = scmp.ne.s32.totalorder %s144, %s158
      %p160 = scmp.eq.s32.totalorder %s33, 0
      %p161 = por %p159, %p160
      %s163 = sadd.s32 %s162, 1
      %p166 = scmp.eq.s32.totalorder %s27, 1
      %p167 = scmp.ne.s32.totalorder %s162, %s164
      %p168 = scmp.eq.s32.totalorder %s27, 0
      %p169 = por %p167, %p168
      %p170 = scmp.ne.s32.totalorder %s162, %s164
      %p171 = scmp.eq.s32.totalorder %s32, 1
      %p172 = por %p170, %p171
      %p173 = scmp.ne.s32.totalorder %s164, %s165
      %p174 = scmp.eq.s32.totalorder %s32, 0
      %p175 = por %p173, %p174
      %p176 = scmp.ne.s32.totalorder %s164, %s165
      %p177 = scmp.eq.s32.totalorder %s33, 1
      %p178 = por %p176, %p177
      %p180 = scmp.ne.s32.totalorder %s165, %s179
      %p181 = scmp.eq.s32.totalorder %s33, 0
      %p182 = por %p180, %p181
      %s184 = sadd.s32 %s183, 1
      %p187 = scmp.eq.s32.totalorder %s27, 1
      %p188 = scmp.ne.s32.totalorder %s183, %s185
      %p189 = scmp.eq.s32.totalorder %s27, 0
      %p190 = por %p188, %p189
      %p191 = scmp.ne.s32.totalorder %s183, %s185
      %p192 = scmp.eq.s32.totalorder %s32, 1
      %p193 = por %p191, %p192
      %p194 = scmp.ne.s32.totalorder %s185, %s186
      %p195 = scmp.eq.s32.totalorder %s32, 0
      %p196 = por %p194, %p195
      %p197 = scmp.ne.s32.totalorder %s185, %s186
      %p198 = scmp.eq.s32.totalorder %s33, 1
      %p199 = por %p197, %p198
      %p201 = scmp.ne.s32.totalorder %s186, %s200
      %p202 = scmp.eq.s32.totalorder %s33, 0
      %p203 = por %p201, %p202
      %s205 = sadd.s32 %s204, 1
      %p208 = scmp.eq.s32.totalorder %s27, 1
      %p209 = scmp.ne.s32.totalorder %s204, %s206
      %p210 = scmp.eq.s32.totalorder %s27, 0
      %p211 = por %p209, %p210
      %p212 = scmp.ne.s32.totalorder %s204, %s206
      %p213 = scmp.eq.s32.totalorder %s32, 1
      %p214 = por %p212, %p213
      %p215 = scmp.ne.s32.totalorder %s206, %s207
      %p216 = scmp.eq.s32.totalorder %s32, 0
      %p217 = por %p215, %p216
      %p218 = scmp.ne.s32.totalorder %s206, %s207
      %p219 = scmp.eq.s32.totalorder %s33, 1
      %p220 = por %p218, %p219
      %p222 = scmp.ne.s32.totalorder %s207, %s221
      %p223 = scmp.eq.s32.totalorder %s33, 0
      %p224 = por %p222, %p223
      %s225 = ssub.s32 %s34, %s46
      %s226 = ssub.s32 %s35, %s42
      %s227 = sor.u32 %s225, %s226
      %p228 = scmp.eq.s32.totalorder %s227, 0
      %s230 = sadd.s32 %s229, 1
      %s231 = scalar_select %p228, %s229, %s230
      %p234 = pneg %p228
      %p235 = scmp.eq.s32.totalorder %s27, 1
      %p236 = por %p234, %p235
      %p237 = scmp.ne.s32.totalorder %s229, %s232
      %p238 = scmp.eq.s32.totalorder %s27, 0
      %p239 = por %p237, %p238
      %p240 = scmp.ne.s32.totalorder %s229, %s232
      %p241 = scmp.eq.s32.totalorder %s32, 1
      %p242 = por %p240, %p241
      %p243 = scmp.ne.s32.totalorder %s232, %s233
      %p244 = scmp.eq.s32.totalorder %s32, 0
      %p245 = por %p243, %p244
      %p246 = scmp.ne.s32.totalorder %s232, %s233
      %p247 = scmp.eq.s32.totalorder %s33, 1
      %p248 = por %p246, %p247
      %p250 = scmp.ne.s32.totalorder %s233, %s249
      %p251 = scmp.eq.s32.totalorder %s33, 0
      %p252 = por %p250, %p251
      %s253 = ssub.s32 %s34, %s46
      %s254 = ssub.s32 %s35, %s42
      %s255 = sor.u32 %s253, %s254
      %p256 = scmp.eq.s32.totalorder %s255, 0
      %s258 = sadd.s32 %s257, 1
      %s259 = scalar_select %p256, %s257, %s258
      %p262 = pneg %p256
      %p263 = scmp.eq.s32.totalorder %s27, 1
      %p264 = por %p262, %p263
      %p265 = scmp.ne.s32.totalorder %s257, %s260
      %p266 = scmp.eq.s32.totalorder %s27, 0
      %p267 = por %p265, %p266
      %p268 = scmp.ne.s32.totalorder %s257, %s260
      %p269 = scmp.eq.s32.totalorder %s32, 1
      %p270 = por %p268, %p269
      %p271 = scmp.ne.s32.totalorder %s260, %s261
      %p272 = scmp.eq.s32.totalorder %s32, 0
      %p273 = por %p271, %p272
      %p274 = scmp.ne.s32.totalorder %s260, %s261
      %p275 = scmp.eq.s32.totalorder %s33, 1
      %p276 = por %p274, %p275
      %p278 = scmp.ne.s32.totalorder %s261, %s277
      %p279 = scmp.eq.s32.totalorder %s33, 0
      %p280 = por %p278, %p279
      %p281 = scmp.le.s32.totalorder 1, %s27
      %p282 = scmp.lt.s32.totalorder %s27, 3
      %p283 = pnand %p281, %p282
      %p284 = pneg %p283
      // Predicated region
      $region9: #{tpu_custom_call.1} parent=5 // pred_check
        _
      $region10: #{tpu_custom_call.1} parent=5 // pred_check_branch
        %286 = sbr.rel (%p283) target = $region12
      $region11: #{tpu_custom_call.1} parent=5 // pred_region
        %s287 = ssub.s32 %s27, 1
        // Predicated region
        $region13: #{tpu_custom_call.1} parent=11 // pred_check
          %p288 = pneg %p65
        $region14: #{tpu_custom_call.1} parent=11 // pred_check_branch
          %290 = sbr.rel (%p288) target = $region16
        $region15: #{tpu_custom_call.1} parent=11 // pred_region
          %s291 = smul.u32 8, %s37
          %s293 = ssub.s32 512, 512
          %294 = vsyncadd [#allocation3], %s293
          %s295 = smul.addr %s291, 64
          %s296 = scalar_lea.hbm %s0, %s295
          %s297 = sshll.u32 [#allocation2], 4
          %s298 = int_to_ptr.vmem [resolvable:$true] %s297
          %303 = dma.hbm_to_vmem [thread:$0]  %s296, 512, %s298, [#allocation3], 64, 64, 4
        $region16: #{tpu_custom_call.1} parent=11 // pred_fallthru
          _
        // Predicated region
        $region17: #{tpu_custom_call.1} parent=11 // pred_check
          %p304 = pneg %p112
        $region18: #{tpu_custom_call.1} parent=11 // pred_check_branch
          %306 = sbr.rel (%p304) target = $region20
        $region19: #{tpu_custom_call.1} parent=11 // pred_region
          %s308 = ssub.s32 1024, 1024
          %309 = vsyncadd [#allocation6], %s308
          %s310 = sshll.u32 [#allocation7], 4
          %s311 = int_to_ptr.vmem [resolvable:$true] %s310
          %316 = dma.hbm_to_vmem [thread:$0]  %s2, 1024, %s311, [#allocation6], 64, 64, 4
        $region20: #{tpu_custom_call.1} parent=11 // pred_fallthru
          _
        // Predicated region
        $region21: #{tpu_custom_call.1} parent=11 // pred_check
          %p317 = pneg %p133
        $region22: #{tpu_custom_call.1} parent=11 // pred_check_branch
          %319 = sbr.rel (%p317) target = $region24
        $region23: #{tpu_custom_call.1} parent=11 // pred_region
          _
        $region24: #{tpu_custom_call.1} parent=11 // pred_fallthru
          _
        // Predicated region
        $region25: #{tpu_custom_call.1} parent=11 // pred_check
          %p320 = pneg %p154
        $region26: #{tpu_custom_call.1} parent=11 // pred_check_branch
          %322 = sbr.rel (%p320) target = $region28
        $region27: #{tpu_custom_call.1} parent=11 // pred_region
          %s324 = ssub.s32 1024, 1024
          %325 = vsyncadd [#allocation9], %s324
          %s326 = sshll.u32 [#allocation8], 4
          %s327 = int_to_ptr.vmem [resolvable:$true] %s326
          %332 = dma.hbm_to_vmem [thread:$0]  %s4, 1024, %s327, [#allocation9], 64, 64, 4
        $region28: #{tpu_custom_call.1} parent=11 // pred_fallthru
          _
        // Predicated region
        $region29: #{tpu_custom_call.1} parent=11 // pred_check
          %p333 = pneg %p175
        $region30: #{tpu_custom_call.1} parent=11 // pred_check_branch
          %335 = sbr.rel (%p333) target = $region32
        $region31: #{tpu_custom_call.1} parent=11 // pred_region
          _
        $region32: #{tpu_custom_call.1} parent=11 // pred_fallthru
          _
        // Predicated region
        $region33: #{tpu_custom_call.1} parent=11 // pred_check
          %p336 = pneg %p196
        $region34: #{tpu_custom_call.1} parent=11 // pred_check_branch
          %338 = sbr.rel (%p336) target = $region36
        $region35: #{tpu_custom_call.1} parent=11 // pred_region
          %s340 = ssub.s32 1024, 1024
          %341 = vsyncadd [#allocation9], %s340
          %s342 = sshll.u32 [#allocation10], 4
          %s343 = int_to_ptr.vmem [resolvable:$true] %s342
          %348 = dma.hbm_to_vmem [thread:$0]  %s6, 1024, %s343, [#allocation9], 64, 64, 4
        $region36: #{tpu_custom_call.1} parent=11 // pred_fallthru
          _
        // Predicated region
        $region37: #{tpu_custom_call.1} parent=11 // pred_check
          %p349 = pneg %p217
        $region38: #{tpu_custom_call.1} parent=11 // pred_check_branch
          %351 = sbr.rel (%p349) target = $region40
        $region39: #{tpu_custom_call.1} parent=11 // pred_region
          _
        $region40: #{tpu_custom_call.1} parent=11 // pred_fallthru
          _
      $region12: #{tpu_custom_call.1} parent=5 // pred_fallthru
        _
      %p352 = scmp.lt.s32.totalorder %s27, 2
      // Predicated region
      $region41: #{tpu_custom_call.1} parent=5 // pred_check
        %p353 = pneg %p352
      $region42: #{tpu_custom_call.1} parent=5 // pred_check_branch
        %355 = sbr.rel (%p353) target = $region44
      $region43: #{tpu_custom_call.1} parent=5 // pred_region
        // Predicated region
        $region45: #{tpu_custom_call.1} parent=43 // pred_check
          %p356 = pneg %p85
        $region46: #{tpu_custom_call.1} parent=43 // pred_check_branch
          %358 = sbr.rel (%p356) target = $region48
        $region47: #{tpu_custom_call.1} parent=43 // pred_region
          %s359 = sand.u32 %s27, 1
          %s360 = scalar_lea.sflag [#allocation6], %s359
          %s361 = sand.u32 %s75, 1
          %s362 = smul.addr %s361, 32
          %s363 = scalar_lea.vmem [#allocation5], %s362
          %s365 = ssub.s32 512, 512
          %366 = vsyncadd %s360, %s365
          %s367 = smul.addr %s34, 8
          %s368 = smul.addr %s367, 64
          %s369 = scalar_lea.hbm %s1, %s368
          %s370 = sshll.u32 %s363, 4
          %s371 = int_to_ptr.vmem [resolvable:$true] %s370
          %376 = dma.hbm_to_vmem [thread:$0]  %s369, 512, %s371, %s360, 64, 64, 4
        $region48: #{tpu_custom_call.1} parent=43 // pred_fallthru
          _
      $region44: #{tpu_custom_call.1} parent=5 // pred_fallthru
        _
      %p377 = scmp.le.s32.totalorder 1, %s27
      %p378 = scmp.lt.s32.totalorder %s27, 3
      %p379 = pnand %p377, %p378
      %p380 = pneg %p379
      // Predicated region
      $region49: #{tpu_custom_call.1} parent=5 // pred_check
        _
      $region50: #{tpu_custom_call.1} parent=5 // pred_check_branch
        %382 = sbr.rel (%p379) target = $region52
      $region51: #{tpu_custom_call.1} parent=5 // pred_region
        %s383 = ssub.s32 %s27, 1
        // Predicated region
        $region53: #{tpu_custom_call.1} parent=51 // pred_check
          %p384 = pneg %p65
        $region54: #{tpu_custom_call.1} parent=51 // pred_check_branch
          %386 = sbr.rel (%p384) target = $region56
        $region55: #{tpu_custom_call.1} parent=51 // pred_region
          %387 = dma.done [#allocation3], 512
        $region56: #{tpu_custom_call.1} parent=51 // pred_fallthru
          _
        %s388 = sand.u32 %s32, 1
        %s389 = scalar_lea.sflag [#allocation6], %s388
        %s390 = sand.u32 %s78, 1
        %s391 = smul.addr %s390, 32
        %s392 = scalar_lea.vmem [#allocation5], %s391
        // Predicated region
        $region57: #{tpu_custom_call.1} parent=51 // pred_check
          %p393 = pneg %p91
        $region58: #{tpu_custom_call.1} parent=51 // pred_check_branch
          %395 = sbr.rel (%p393) target = $region60
        $region59: #{tpu_custom_call.1} parent=51 // pred_region
          %396 = dma.done %s389, 512
        $region60: #{tpu_custom_call.1} parent=51 // pred_fallthru
          _
        // Predicated region
        $region61: #{tpu_custom_call.1} parent=51 // pred_check
          %p397 = pneg %p112
        $region62: #{tpu_custom_call.1} parent=51 // pred_check_branch
          %399 = sbr.rel (%p397) target = $region64
        $region63: #{tpu_custom_call.1} parent=51 // pred_region
          %400 = dma.done [#allocation6], 1024
        $region64: #{tpu_custom_call.1} parent=51 // pred_fallthru
          _
        // Predicated region
        $region65: #{tpu_custom_call.1} parent=51 // pred_check
          %p401 = pneg %p154
        $region66: #{tpu_custom_call.1} parent=51 // pred_check_branch
          %403 = sbr.rel (%p401) target = $region68
        $region67: #{tpu_custom_call.1} parent=51 // pred_region
          %404 = dma.done [#allocation9], 1024
        $region68: #{tpu_custom_call.1} parent=51 // pred_fallthru
          _
        // Predicated region
        $region69: #{tpu_custom_call.1} parent=51 // pred_check
          %p405 = pneg %p196
        $region70: #{tpu_custom_call.1} parent=51 // pred_check_branch
          %407 = sbr.rel (%p405) target = $region72
        $region71: #{tpu_custom_call.1} parent=51 // pred_region
          %408 = dma.done [#allocation9], 1024
        $region72: #{tpu_custom_call.1} parent=51 // pred_fallthru
          _
        %p409 = pneg %p65
        %p410 = pneg %p62
        %s411 = sand.u32 %s32, 1
        %s412 = scalar_lea.sflag [#allocation6], %s411
        %s413 = sand.u32 %s78, 1
        %s414 = smul.addr %s413, 32
        %s415 = scalar_lea.vmem [#allocation5], %s414
        %p416 = pneg %p91
        %p417 = pneg %p88
        %p418 = pneg %p112
        %p419 = pneg %p109
        %p420 = pneg %p133
        %p421 = pneg %p130
        %p422 = pneg %p154
        %p423 = pneg %p151
        %p424 = pneg %p175
        %p425 = pneg %p172
        %p426 = pneg %p196
        %p427 = pneg %p193
        %p428 = pneg %p217
        %p429 = pneg %p214
        %p430 = pneg %p245
        %p431 = pneg %p242
        %s432 = sand.u32 %s232, 1
        %s433 = scalar_lea.sflag [#allocation4], %s432
        %s434 = sand.u32 %s232, 1
        %s435 = smul.addr %s434, 32
        %s436 = scalar_lea.vmem [#allocation11], %s435
        %p437 = pneg %p273
        %p438 = pneg %p270
        %s439 = sand.u32 %s260, 1
        %s440 = scalar_lea.sflag [#allocation13], %s439
        %s441 = sand.u32 %s260, 1
        %s442 = smul.addr %s441, 64
        %s443 = scalar_lea.vmem [#allocation12], %s442
        %s444 = smul.u32 8, %s37
        %s445 = smul.u32 8, %s37
        %s446 = smul.u32 8, %s37
        %v448 = vld [vmem:[#allocation2] sm:$0xf]
        %v449 = vld [vmem:[#allocation2 + $0x4] sm:$0xf]
        %v450 = vld [vmem:[#allocation2 + $0x8] sm:$0xf]
        %v451 = vld [vmem:[#allocation2 + $0xc] sm:$0xf]
        %v452 = vld [vmem:[#allocation2 + $0x10] sm:$0xf]
        %v453 = vld [vmem:[#allocation2 + $0x14] sm:$0xf]
        %v454 = vld [vmem:[#allocation2 + $0x18] sm:$0xf]
        %v455 = vld [vmem:[#allocation2 + $0x1c] sm:$0xf]
        %v456 = vld [vmem:[%s392] sm:$0xf]
        %v457 = vld [vmem:[%s392 + $0x4] sm:$0xf]
        %v458 = vld [vmem:[%s392 + $0x8] sm:$0xf]
        %v459 = vld [vmem:[%s392 + $0xc] sm:$0xf]
        %v460 = vld [vmem:[%s392 + $0x10] sm:$0xf]
        %v461 = vld [vmem:[%s392 + $0x14] sm:$0xf]
        %v462 = vld [vmem:[%s392 + $0x18] sm:$0xf]
        %v463 = vld [vmem:[%s392 + $0x1c] sm:$0xf]
        %v464 = vadd.bf16 %v448, %v456
        %v465 = vadd.bf16 %v449, %v457
        %v466 = vadd.bf16 %v450, %v458
        %v467 = vadd.bf16 %v451, %v459
        %v468 = vadd.bf16 %v452, %v460
        %v469 = vadd.bf16 %v453, %v461
        %v470 = vadd.bf16 %v454, %v462
        %v471 = vadd.bf16 %v455, %v463
        %v472 = vld [vmem:[#allocation7] sm:$0xf]
        %v473 = vld [vmem:[#allocation7 + $0x4] sm:$0xf]
        %v474 = vld [vmem:[#allocation7 + $0x8] sm:$0xf]
        %v475 = vld [vmem:[#allocation7 + $0xc] sm:$0xf]
        %v476 = vld [vmem:[#allocation7 + $0x10] sm:$0xf]
        %v477 = vld [vmem:[#allocation7 + $0x14] sm:$0xf]
        %v478 = vld [vmem:[#allocation7 + $0x18] sm:$0xf]
        %v479 = vld [vmem:[#allocation7 + $0x1c] sm:$0xf]
        %v480 = vld [vmem:[#allocation7 + $0x20] sm:$0xf]
        %v481 = vld [vmem:[#allocation7 + $0x24] sm:$0xf]
        %v482 = vld [vmem:[#allocation7 + $0x28] sm:$0xf]
        %v483 = vld [vmem:[#allocation7 + $0x2c] sm:$0xf]
        %v484 = vld [vmem:[#allocation7 + $0x30] sm:$0xf]
        %v485 = vld [vmem:[#allocation7 + $0x34] sm:$0xf]
        %v486 = vld [vmem:[#allocation7 + $0x38] sm:$0xf]
        %v487 = vld [vmem:[#allocation7 + $0x3c] sm:$0xf]
        %v488 = vld [vmem:[%s3] sm:$0x1]
        %v490 = vlaneseq
        %v491 = vshrl.u32 %v490, 7
        %v492 = vsub.s32 0, %v491
        %v493 = vrot.slane %v488, %v492
        %v503 = vunpack.c.l.b16 %v464
        %v504 = vunpack.c.l.b16 %v465
        %v505 = vunpack.c.l.b16 %v466
        %v506 = vunpack.c.l.b16 %v467
        %v507 = vunpack.c.l.b16 %v468
        %v508 = vunpack.c.l.b16 %v469
        %v509 = vunpack.c.l.b16 %v470
        %v510 = vunpack.c.l.b16 %v471
        %v511 = vpack.c.b16 %v504, %v503
        %v512 = vpack.c.b16 %v506, %v505
        %v513 = vpack.c.b16 %v508, %v507
        %v514 = vpack.c.b16 %v510, %v509
        %v535 = vunpack.c.l.b16 %v472
        %v536 = vunpack.c.l.b16 %v473
        %v537 = vunpack.c.l.b16 %v474
        %v538 = vunpack.c.l.b16 %v475
        %v539 = vunpack.c.l.b16 %v476
        %v540 = vunpack.c.l.b16 %v477
        %v541 = vunpack.c.l.b16 %v478
        %v542 = vunpack.c.l.b16 %v479
        %v543 = vunpack.c.l.b16 %v480
        %v544 = vunpack.c.l.b16 %v481
        %v545 = vunpack.c.l.b16 %v482
        %v546 = vunpack.c.l.b16 %v483
        %v547 = vunpack.c.l.b16 %v484
        %v548 = vunpack.c.l.b16 %v485
        %v549 = vunpack.c.l.b16 %v486
        %v550 = vunpack.c.l.b16 %v487
        %v551 = vpack.c.b16 %v536, %v535
        %v552 = vpack.c.b16 %v538, %v537
        %v553 = vpack.c.b16 %v540, %v539
        %v554 = vpack.c.b16 %v542, %v541
        %v555 = vpack.c.b16 %v544, %v543
        %v556 = vpack.c.b16 %v546, %v545
        %v557 = vpack.c.b16 %v548, %v547
        %v558 = vpack.c.b16 %v550, %v549
        %567 = vmatprep.subr.bf16.mxu0 0
        %568 = vmatpush1.bf16.msra.mxu0 %v551
        %569 = vmatprep.subr.bf16.mxu0 0
        %570 = vmatpush1.bf16.msra.mxu0 %v552
        %571 = vmatprep.subr.bf16.mxu0 0
        %572 = vmatpush1.bf16.msra.mxu0 %v553
        %573 = vmatprep.subr.bf16.mxu0 0
        %574 = vmatpush1.bf16.msra.mxu0 %v554
        %575 = vmatprep.subr.bf16.mxu0 0
        %576 = vmatpush1.bf16.msra.mxu0 %v555
        %577 = vmatprep.subr.bf16.mxu0 0
        %578 = vmatpush1.bf16.msra.mxu0 %v556
        %579 = vmatprep.subr.bf16.mxu0 0
        %580 = vmatpush1.bf16.msra.mxu0 %v557
        %581 = vmatprep.subr.bf16.mxu0 0
        %582 = vmatpush1.bf16.msra.mxu0 %v558
        %583 = vmatprep.subr.bf16.mxu0 0
        %584 = vmatpush1.bf16.msra.mxu0 0
        %585 = vmatprep.subr.bf16.mxu0 0
        %586 = vmatpush1.bf16.msra.mxu0 0
        %587 = vmatprep.subr.bf16.mxu0 0
        %588 = vmatpush1.bf16.msra.mxu0 0
        %589 = vmatprep.subr.bf16.mxu0 0
        %590 = vmatpush1.bf16.msra.mxu0 0
        %591 = vmatprep.subr.bf16.mxu0 0
        %592 = vmatpush1.bf16.msra.mxu0 0
        %593 = vmatprep.subr.bf16.mxu0 0
        %594 = vmatpush1.bf16.msra.mxu0 0
        %595 = vmatprep.subr.bf16.mxu0 0
        %596 = vmatpush1.bf16.msra.mxu0 0
        %597 = vmatprep.subr.bf16.mxu0 0
        %598 = vmatpush1.bf16.msra.mxu0 0
        %599 = vmatprep.mubr.bf16.mxu0 0
        %600 = vmatmul.mubr.bf16.gmra.mrb[0].mxu0 %v511
        %v601 = vpop.f32.mrb[0].mxu0
        %v602 = vadd.f32 %v493, %v601
        %v603 = vpop.f32.mrb[0].mxu0
        %v604 = vpop.f32.mrb[0].mxu0
        %v605 = vadd.f32 %v493, %v604
        %v606 = vpop.f32.mrb[0].mxu0
        %607 = vmatprep.mubr.bf16.mxu0 0
        %608 = vmatmul.mubr.bf16.gmra.mrb[0].mxu0 %v512
        %v609 = vpop.f32.mrb[0].mxu0
        %v610 = vadd.f32 %v493, %v609
        %v611 = vpop.f32.mrb[0].mxu0
        %v612 = vpop.f32.mrb[0].mxu0
        %v613 = vadd.f32 %v493, %v612
        %v614 = vpop.f32.mrb[0].mxu0
        %615 = vmatprep.mubr.bf16.mxu0 0
        %616 = vmatmul.mubr.bf16.gmra.mrb[0].mxu0 %v513
        %v617 = vpop.f32.mrb[0].mxu0
        %v618 = vadd.f32 %v493, %v617
        %v619 = vpop.f32.mrb[0].mxu0
        %v620 = vpop.f32.mrb[0].mxu0
        %v621 = vadd.f32 %v493, %v620
        %v622 = vpop.f32.mrb[0].mxu0
        %623 = vmatprep.mubr.bf16.mxu0 0
        %624 = vmatmul.mubr.bf16.gmra.mrb[0].mxu0 %v514
        %v625 = vpop.f32.mrb[0].mxu0
        %v626 = vadd.f32 %v493, %v625
        %v627 = vpop.f32.mrb[0].mxu0
        %v628 = vpop.f32.mrb[0].mxu0
        %v629 = vadd.f32 %v493, %v628
        %v630 = vpop.f32.mrb[0].mxu0
        %631 = vdwg.mxu0
        %v632 = vmul.f32 %v602, %v602
        %v633 = vmul.f32 %v605, %v605
        %v634 = vmul.f32 %v610, %v610
        %v635 = vmul.f32 %v613, %v613
        %v636 = vmul.f32 %v618, %v618
        %v637 = vmul.f32 %v621, %v621
        %v638 = vmul.f32 %v626, %v626
        %v639 = vmul.f32 %v629, %v629
        %v640 = vmul.f32 %v602, %v632
        %v641 = vmul.f32 %v605, %v633
        %v642 = vmul.f32 %v610, %v634
        %v643 = vmul.f32 %v613, %v635
        %v644 = vmul.f32 %v618, %v636
        %v645 = vmul.f32 %v621, %v637
        %v646 = vmul.f32 %v626, %v638
        %v647 = vmul.f32 %v629, %v639
        %v648 = vmul.f32 %v640, 0.044715
        %v649 = vmul.f32 %v641, 0.044715
        %v650 = vmul.f32 %v642, 0.044715
        %v651 = vmul.f32 %v643, 0.044715
        %v652 = vmul.f32 %v644, 0.044715
        %v653 = vmul.f32 %v645, 0.044715
        %v654 = vmul.f32 %v646, 0.044715
        %v655 = vmul.f32 %v647, 0.044715
        %v656 = vadd.f32 %v602, %v648
        %v657 = vadd.f32 %v605, %v649
        %v658 = vadd.f32 %v610, %v650
        %v659 = vadd.f32 %v613, %v651
        %v660 = vadd.f32 %v618, %v652
        %v661 = vadd.f32 %v621, %v653
        %v662 = vadd.f32 %v626, %v654
        %v663 = vadd.f32 %v629, %v655
        %v664 = vmul.f32 %v656, 0.7978846
        %v665 = vmul.f32 %v657, 0.7978846
        %v666 = vmul.f32 %v658, 0.7978846
        %v667 = vmul.f32 %v659, 0.7978846
        %v668 = vmul.f32 %v660, 0.7978846
        %v669 = vmul.f32 %v661, 0.7978846
        %v670 = vmul.f32 %v662, 0.7978846
        %v671 = vmul.f32 %v663, 0.7978846
        %v672 = vtanh.pop %v664
        %v673 = vtanh.pop %v665
        %v674 = vtanh.pop %v666
        %v675 = vtanh.pop %v667
        %v676 = vtanh.pop %v668
        %v677 = vtanh.pop %v669
        %v678 = vtanh.pop %v670
        %v679 = vtanh.pop %v671
        %v680 = vadd.f32 %v672, 1.0
        %v681 = vadd.f32 %v673, 1.0
        %v682 = vadd.f32 %v674, 1.0
        %v683 = vadd.f32 %v675, 1.0
        %v684 = vadd.f32 %v676, 1.0
        %v685 = vadd.f32 %v677, 1.0
        %v686 = vadd.f32 %v678, 1.0
        %v687 = vadd.f32 %v679, 1.0
        %v688 = vmul.f32 %v680, 0.5
        %v689 = vmul.f32 %v681, 0.5
        %v690 = vmul.f32 %v682, 0.5
        %v691 = vmul.f32 %v683, 0.5
        %v692 = vmul.f32 %v684, 0.5
        %v693 = vmul.f32 %v685, 0.5
        %v694 = vmul.f32 %v686, 0.5
        %v695 = vmul.f32 %v687, 0.5
        %v696 = vmul.f32 %v602, %v688
        %v697 = vmul.f32 %v605, %v689
        %v698 = vmul.f32 %v610, %v690
        %v699 = vmul.f32 %v613, %v691
        %v700 = vmul.f32 %v618, %v692
        %v701 = vmul.f32 %v621, %v693
        %v702 = vmul.f32 %v626, %v694
        %v703 = vmul.f32 %v629, %v695
        %v704 = vpack.c.bf16 %v697, %v696
        %v705 = vpack.c.bf16 %v699, %v698
        %v706 = vpack.c.bf16 %v701, %v700
        %v707 = vpack.c.bf16 %v703, %v702
        %v708 = vld [vmem:[#allocation8] sm:$0xf]
        %v709 = vld [vmem:[#allocation8 + $0x4] sm:$0xf]
        %v710 = vld [vmem:[#allocation8 + $0x8] sm:$0xf]
        %v711 = vld [vmem:[#allocation8 + $0xc] sm:$0xf]
        %v712 = vld [vmem:[#allocation8 + $0x10] sm:$0xf]
        %v713 = vld [vmem:[#allocation8 + $0x14] sm:$0xf]
        %v714 = vld [vmem:[#allocation8 + $0x18] sm:$0xf]
        %v715 = vld [vmem:[#allocation8 + $0x1c] sm:$0xf]
        %v716 = vld [vmem:[#allocation8 + $0x20] sm:$0xf]
        %v717 = vld [vmem:[#allocation8 + $0x24] sm:$0xf]
        %v718 = vld [vmem:[#allocation8 + $0x28] sm:$0xf]
        %v719 = vld [vmem:[#allocation8 + $0x2c] sm:$0xf]
        %v720 = vld [vmem:[#allocation8 + $0x30] sm:$0xf]
        %v721 = vld [vmem:[#allocation8 + $0x34] sm:$0xf]
        %v722 = vld [vmem:[#allocation8 + $0x38] sm:$0xf]
        %v723 = vld [vmem:[#allocation8 + $0x3c] sm:$0xf]
        %v724 = vld [vmem:[%s5] sm:$0x1]
        %v726 = vlaneseq
        %v727 = vshrl.u32 %v726, 7
        %v728 = vsub.s32 0, %v727
        %v729 = vrot.slane %v724, %v728
        %v747 = vunpack.c.l.b16 %v708
        %v748 = vunpack.c.l.b16 %v709
        %v749 = vunpack.c.l.b16 %v710
        %v750 = vunpack.c.l.b16 %v711
        %v751 = vunpack.c.l.b16 %v712
        %v752 = vunpack.c.l.b16 %v713
        %v753 = vunpack.c.l.b16 %v714
        %v754 = vunpack.c.l.b16 %v715
        %v755 = vunpack.c.l.b16 %v716
        %v756 = vunpack.c.l.b16 %v717
        %v757 = vunpack.c.l.b16 %v718
        %v758 = vunpack.c.l.b16 %v719
        %v759 = vunpack.c.l.b16 %v720
        %v760 = vunpack.c.l.b16 %v721
        %v761 = vunpack.c.l.b16 %v722
        %v762 = vunpack.c.l.b16 %v723
        %v763 = vpack.c.b16 %v748, %v747
        %v764 = vpack.c.b16 %v750, %v749
        %v765 = vpack.c.b16 %v752, %v751
        %v766 = vpack.c.b16 %v754, %v753
        %v767 = vpack.c.b16 %v756, %v755
        %v768 = vpack.c.b16 %v758, %v757
        %v769 = vpack.c.b16 %v760, %v759
        %v770 = vpack.c.b16 %v762, %v761
        %779 = vmatprep.subr.bf16.mxu0 0
        %780 = vmatpush1.bf16.msra.mxu0 %v763
        %781 = vmatprep.subr.bf16.mxu0 0
        %782 = vmatpush1.bf16.msra.mxu0 %v764
        %783 = vmatprep.subr.bf16.mxu0 0
        %784 = vmatpush1.bf16.msra.mxu0 %v765
        %785 = vmatprep.subr.bf16.mxu0 0
        %786 = vmatpush1.bf16.msra.mxu0 %v766
        %787 = vmatprep.subr.bf16.mxu0 0
        %788 = vmatpush1.bf16.msra.mxu0 %v767
        %789 = vmatprep.subr.bf16.mxu0 0
        %790 = vmatpush1.bf16.msra.mxu0 %v768
        %791 = vmatprep.subr.bf16.mxu0 0
        %792 = vmatpush1.bf16.msra.mxu0 %v769
        %793 = vmatprep.subr.bf16.mxu0 0
        %794 = vmatpush1.bf16.msra.mxu0 %v770
        %795 = vmatprep.subr.bf16.mxu0 0
        %796 = vmatpush1.bf16.msra.mxu0 0
        %797 = vmatprep.subr.bf16.mxu0 0
        %798 = vmatpush1.bf16.msra.mxu0 0
        %799 = vmatprep.subr.bf16.mxu0 0
        %800 = vmatpush1.bf16.msra.mxu0 0
        %801 = vmatprep.subr.bf16.mxu0 0
        %802 = vmatpush1.bf16.msra.mxu0 0
        %803 = vmatprep.subr.bf16.mxu0 0
        %804 = vmatpush1.bf16.msra.mxu0 0
        %805 = vmatprep.subr.bf16.mxu0 0
        %806 = vmatpush1.bf16.msra.mxu0 0
        %807 = vmatprep.subr.bf16.mxu0 0
        %808 = vmatpush1.bf16.msra.mxu0 0
        %809 = vmatprep.subr.bf16.mxu0 0
        %810 = vmatpush1.bf16.msra.mxu0 0
        %811 = vmatprep.mubr.bf16.mxu0 0
        %812 = vmatmul.mubr.bf16.gmra.mrb[0].mxu0 %v704
        %v813 = vpop.f32.mrb[0].mxu0
        %v814 = vadd.f32 %v729, %v813
        %v815 = vpop.f32.mrb[0].mxu0
        %v816 = vpop.f32.mrb[0].mxu0
        %v817 = vadd.f32 %v729, %v816
        %v818 = vpop.f32.mrb[0].mxu0
        %819 = vmatprep.mubr.bf16.mxu0 0
        %820 = vmatmul.mubr.bf16.gmra.mrb[0].mxu0 %v705
        %v821 = vpop.f32.mrb[0].mxu0
        %v822 = vadd.f32 %v729, %v821
        %v823 = vpop.f32.mrb[0].mxu0
        %v824 = vpop.f32.mrb[0].mxu0
        %v825 = vadd.f32 %v729, %v824
        %v826 = vpop.f32.mrb[0].mxu0
        %827 = vmatprep.mubr.bf16.mxu0 0
        %828 = vmatmul.mubr.bf16.gmra.mrb[0].mxu0 %v706
        %v829 = vpop.f32.mrb[0].mxu0
        %v830 = vadd.f32 %v729, %v829
        %v831 = vpop.f32.mrb[0].mxu0
        %v832 = vpop.f32.mrb[0].mxu0
        %v833 = vadd.f32 %v729, %v832
        %v834 = vpop.f32.mrb[0].mxu0
        %835 = vmatprep.mubr.bf16.mxu0 0
        %836 = vmatmul.mubr.bf16.gmra.mrb[0].mxu0 %v707
        %v837 = vpop.f32.mrb[0].mxu0
        %v838 = vadd.f32 %v729, %v837
        %v839 = vpop.f32.mrb[0].mxu0
        %v840 = vpop.f32.mrb[0].mxu0
        %v841 = vadd.f32 %v729, %v840
        %v842 = vpop.f32.mrb[0].mxu0
        %843 = vdwg.mxu0
        %v844 = vpack.c.bf16 %v817, %v814
        %v845 = vpack.c.bf16 %v825, %v822
        %v846 = vpack.c.bf16 %v833, %v830
        %v847 = vpack.c.bf16 %v841, %v838
        %v852 = vunpack.c.l.b16 %v844
        %v853 = vunpack.c.h.b16 %v844
        %v854 = vunpack.c.l.b16 %v845
        %v855 = vunpack.c.h.b16 %v845
        %v856 = vunpack.c.l.b16 %v846
        %v857 = vunpack.c.h.b16 %v846
        %v858 = vunpack.c.l.b16 %v847
        %v859 = vunpack.c.h.b16 %v847
        %v860 = vpack.c.b16 %v852, %v852
        %v861 = vpack.c.b16 %v853, %v853
        %v862 = vpack.c.b16 %v854, %v854
        %v863 = vpack.c.b16 %v855, %v855
        %v864 = vpack.c.b16 %v856, %v856
        %v865 = vpack.c.b16 %v857, %v857
        %v866 = vpack.c.b16 %v858, %v858
        %v867 = vpack.c.b16 %v859, %v859
        %876 = vst [vmem:[%s436] sm:$0xf] %v860
        %877 = vst [vmem:[%s436 + $0x4] sm:$0xf] %v861
        %878 = vst [vmem:[%s436 + $0x8] sm:$0xf] %v862
        %879 = vst [vmem:[%s436 + $0xc] sm:$0xf] %v863
        %880 = vst [vmem:[%s436 + $0x10] sm:$0xf] %v864
        %881 = vst [vmem:[%s436 + $0x14] sm:$0xf] %v865
        %882 = vst [vmem:[%s436 + $0x18] sm:$0xf] %v866
        %883 = vst [vmem:[%s436 + $0x1c] sm:$0xf] %v867
        %v884 = vld [vmem:[#allocation10] sm:$0xf]
        %v885 = vld [vmem:[#allocation10 + $0x4] sm:$0xf]
        %v886 = vld [vmem:[#allocation10 + $0x8] sm:$0xf]
        %v887 = vld [vmem:[#allocation10 + $0xc] sm:$0xf]
        %v888 = vld [vmem:[#allocation10 + $0x10] sm:$0xf]
        %v889 = vld [vmem:[#allocation10 + $0x14] sm:$0xf]
        %v890 = vld [vmem:[#allocation10 + $0x18] sm:$0xf]
        %v891 = vld [vmem:[#allocation10 + $0x1c] sm:$0xf]
        %v892 = vld [vmem:[#allocation10 + $0x20] sm:$0xf]
        %v893 = vld [vmem:[#allocation10 + $0x24] sm:$0xf]
        %v894 = vld [vmem:[#allocation10 + $0x28] sm:$0xf]
        %v895 = vld [vmem:[#allocation10 + $0x2c] sm:$0xf]
        %v896 = vld [vmem:[#allocation10 + $0x30] sm:$0xf]
        %v897 = vld [vmem:[#allocation10 + $0x34] sm:$0xf]
        %v898 = vld [vmem:[#allocation10 + $0x38] sm:$0xf]
        %v899 = vld [vmem:[#allocation10 + $0x3c] sm:$0xf]
        %v900 = vld [vmem:[%s7] sm:$0x1]
        %v902 = vlaneseq
        %v903 = vshrl.u32 %v902, 7
        %v904 = vsub.s32 0, %v903
        %v905 = vrot.slane %v900, %v904
        %v923 = vunpack.c.l.b16 %v884
        %v924 = vunpack.c.l.b16 %v885
        %v925 = vunpack.c.l.b16 %v886
        %v926 = vunpack.c.l.b16 %v887
        %v927 = vunpack.c.l.b16 %v888
        %v928 = vunpack.c.l.b16 %v889
        %v929 = vunpack.c.l.b16 %v890
        %v930 = vunpack.c.l.b16 %v891
        %v931 = vunpack.c.l.b16 %v892
        %v932 = vunpack.c.l.b16 %v893
        %v933 = vunpack.c.l.b16 %v894
        %v934 = vunpack.c.l.b16 %v895
        %v935 = vunpack.c.l.b16 %v896
        %v936 = vunpack.c.l.b16 %v897
        %v937 = vunpack.c.l.b16 %v898
        %v938 = vunpack.c.l.b16 %v899
        %v939 = vpack.c.b16 %v924, %v923
        %v940 = vpack.c.b16 %v926, %v925
        %v941 = vpack.c.b16 %v928, %v927
        %v942 = vpack.c.b16 %v930, %v929
        %v943 = vpack.c.b16 %v932, %v931
        %v944 = vpack.c.b16 %v934, %v933
        %v945 = vpack.c.b16 %v936, %v935
        %v946 = vpack.c.b16 %v938, %v937
        %955 = vmatprep.subr.bf16.mxu0 0
        %956 = vmatpush1.bf16.msra.mxu0 %v939
        %957 = vmatprep.subr.bf16.mxu0 0
        %958 = vmatpush1.bf16.msra.mxu0 %v940
        %959 = vmatprep.subr.bf16.mxu0 0
        %960 = vmatpush1.bf16.msra.mxu0 %v941
        %961 = vmatprep.subr.bf16.mxu0 0
        %962 = vmatpush1.bf16.msra.mxu0 %v942
        %963 = vmatprep.subr.bf16.mxu0 0
        %964 = vmatpush1.bf16.msra.mxu0 %v943
        %965 = vmatprep.subr.bf16.mxu0 0
        %966 = vmatpush1.bf16.msra.mxu0 %v944
        %967 = vmatprep.subr.bf16.mxu0 0
        %968 = vmatpush1.bf16.msra.mxu0 %v945
        %969 = vmatprep.subr.bf16.mxu0 0
        %970 = vmatpush1.bf16.msra.mxu0 %v946
        %971 = vmatprep.subr.bf16.mxu0 0
        %972 = vmatpush1.bf16.msra.mxu0 0
        %973 = vmatprep.subr.bf16.mxu0 0
        %974 = vmatpush1.bf16.msra.mxu0 0
        %975 = vmatprep.subr.bf16.mxu0 0
        %976 = vmatpush1.bf16.msra.mxu0 0
        %977 = vmatprep.subr.bf16.mxu0 0
        %978 = vmatpush1.bf16.msra.mxu0 0
        %979 = vmatprep.subr.bf16.mxu0 0
        %980 = vmatpush1.bf16.msra.mxu0 0
        %981 = vmatprep.subr.bf16.mxu0 0
        %982 = vmatpush1.bf16.msra.mxu0 0
        %983 = vmatprep.subr.bf16.mxu0 0
        %984 = vmatpush1.bf16.msra.mxu0 0
        %985 = vmatprep.subr.bf16.mxu0 0
        %986 = vmatpush1.bf16.msra.mxu0 0
        %987 = vmatprep.mubr.bf16.mxu0 0
        %988 = vmatmul.mubr.bf16.gmra.mrb[0].mxu0 %v844
        %v989 = vpop.f32.mrb[0].mxu0
        %v990 = vadd.f32 %v905, %v989
        %v991 = vpop.f32.mrb[0].mxu0
        %v992 = vpop.f32.mrb[0].mxu0
        %v993 = vadd.f32 %v905, %v992
        %v994 = vpop.f32.mrb[0].mxu0
        %995 = vmatprep.mubr.bf16.mxu0 0
        %996 = vmatmul.mubr.bf16.gmra.mrb[0].mxu0 %v845
        %v997 = vpop.f32.mrb[0].mxu0
        %v998 = vadd.f32 %v905, %v997
        %v999 = vpop.f32.mrb[0].mxu0
        %v1000 = vpop.f32.mrb[0].mxu0
        %v1001 = vadd.f32 %v905, %v1000
        %v1002 = vpop.f32.mrb[0].mxu0
        %1003 = vmatprep.mubr.bf16.mxu0 0
        %1004 = vmatmul.mubr.bf16.gmra.mrb[0].mxu0 %v846
        %v1005 = vpop.f32.mrb[0].mxu0
        %v1006 = vadd.f32 %v905, %v1005
        %v1007 = vpop.f32.mrb[0].mxu0
        %v1008 = vpop.f32.mrb[0].mxu0
        %v1009 = vadd.f32 %v905, %v1008
        %v1010 = vpop.f32.mrb[0].mxu0
        %1011 = vmatprep.mubr.bf16.mxu0 0
        %1012 = vmatmul.mubr.bf16.gmra.mrb[0].mxu0 %v847
        %v1013 = vpop.f32.mrb[0].mxu0
        %v1014 = vadd.f32 %v905, %v1013
        %v1015 = vpop.f32.mrb[0].mxu0
        %v1016 = vpop.f32.mrb[0].mxu0
        %v1017 = vadd.f32 %v905, %v1016
        %v1018 = vpop.f32.mrb[0].mxu0
        %1019 = vdwg.mxu0
        %1020 = vst [vmem:[%s443] sm:$0xff] %v990
        %1021 = vst [vmem:[%s443 + $0x8] sm:$0xff] %v993
        %1022 = vst [vmem:[%s443 + $0x10] sm:$0xff] %v998
        %1023 = vst [vmem:[%s443 + $0x18] sm:$0xff] %v1001
        %1024 = vst [vmem:[%s443 + $0x20] sm:$0xff] %v1006
        %1025 = vst [vmem:[%s443 + $0x28] sm:$0xff] %v1009
        %1026 = vst [vmem:[%s443 + $0x30] sm:$0xff] %v1014
        %1027 = vst [vmem:[%s443 + $0x38] sm:$0xff] %v1017
        %s1028 = sand.u32 %s232, 1
        %s1029 = scalar_lea.sflag [#allocation4], %s1028
        %s1030 = sand.u32 %s232, 1
        %s1031 = smul.addr %s1030, 32
        %s1032 = scalar_lea.vmem [#allocation11], %s1031
        %s1033 = sand.u32 %s260, 1
        %s1034 = scalar_lea.sflag [#allocation13], %s1033
        %s1035 = sand.u32 %s260, 1
        %s1036 = smul.addr %s1035, 64
        %s1037 = scalar_lea.vmem [#allocation12], %s1036
        // Predicated region
        $region73: #{tpu_custom_call.1} parent=51 // pred_check
          %p1038 = pneg %p242
        $region74: #{tpu_custom_call.1} parent=51 // pred_check_branch
          %1040 = sbr.rel (%p1038) target = $region76
        $region75: #{tpu_custom_call.1} parent=51 // pred_region
          %s1041 = smul.u32 8, %s37
          %s1043 = ssub.s32 512, 512
          %1044 = vsyncadd %s1029, %s1043
          %s1045 = smul.addr %s36, 8
          %s1046 = sadd.s32 %s1041, %s1045
          %s1047 = smul.addr %s1046, 64
          %s1048 = scalar_lea.hbm %s8, %s1047
          %s1049 = sshll.u32 %s1032, 4
          %s1050 = int_to_ptr.vmem [resolvable:$true] %s1049
          %1055 = dma.vmem_to_hbm [thread:$0]  %s1050, 512, %s1048, %s1029, 64, 64, 4
        $region76: #{tpu_custom_call.1} parent=51 // pred_fallthru
          _
        // Predicated region
        $region77: #{tpu_custom_call.1} parent=51 // pred_check
          %p1056 = pneg %p270
        $region78: #{tpu_custom_call.1} parent=51 // pred_check_branch
          %1058 = sbr.rel (%p1056) target = $region80
        $region79: #{tpu_custom_call.1} parent=51 // pred_region
          %s1059 = smul.u32 8, %s37
          %s1061 = ssub.s32 1024, 1024
          %1062 = vsyncadd %s1034, %s1061
          %s1063 = smul.addr %s36, 8
          %s1064 = sadd.s32 %s1059, %s1063
          %s1065 = smul.addr %s1064, 128
          %s1066 = scalar_lea.hbm %s9, %s1065
          %s1067 = sshll.u32 %s1037, 4
          %s1068 = int_to_ptr.vmem [resolvable:$true] %s1067
          %1073 = dma.vmem_to_hbm [thread:$0]  %s1068, 1024, %s1066, %s1034, 128, 128, 8
        $region80: #{tpu_custom_call.1} parent=51 // pred_fallthru
          _
      $region52: #{tpu_custom_call.1} parent=5 // pred_fallthru
        _
      %p1074 = scmp.le.s32.totalorder 2, %s27
      // Predicated region
      $region81: #{tpu_custom_call.1} parent=5 // pred_check
        %p1075 = pneg %p1074
      $region82: #{tpu_custom_call.1} parent=5 // pred_check_branch
        %1077 = sbr.rel (%p1075) target = $region84
      $region83: #{tpu_custom_call.1} parent=5 // pred_region
        %s1078 = ssub.s32 %s27, 2
        // Predicated region
        $region85: #{tpu_custom_call.1} parent=83 // pred_check
          %p1079 = pneg %p248
        $region86: #{tpu_custom_call.1} parent=83 // pred_check_branch
          %1081 = sbr.rel (%p1079) target = $region88
        $region87: #{tpu_custom_call.1} parent=83 // pred_region
          %s1082 = sand.u32 %s233, 1
          %s1083 = scalar_lea.sflag [#allocation4], %s1082
          %s1084 = sand.u32 %s233, 1
          %s1085 = smul.addr %s1084, 32
          %s1086 = scalar_lea.vmem [#allocation11], %s1085
          %1087 = dma.done %s1083, 512
        $region88: #{tpu_custom_call.1} parent=83 // pred_fallthru
          _
        // Predicated region
        $region89: #{tpu_custom_call.1} parent=83 // pred_check
          %p1088 = pneg %p276
        $region90: #{tpu_custom_call.1} parent=83 // pred_check_branch
          %1090 = sbr.rel (%p1088) target = $region92
        $region91: #{tpu_custom_call.1} parent=83 // pred_region
          %s1091 = sand.u32 %s261, 1
          %s1092 = scalar_lea.sflag [#allocation13], %s1091
          %s1093 = sand.u32 %s261, 1
          %s1094 = smul.addr %s1093, 64
          %s1095 = scalar_lea.vmem [#allocation12], %s1094
          %1096 = dma.done %s1092, 1024
        $region92: #{tpu_custom_call.1} parent=83 // pred_fallthru
          _
      $region84: #{tpu_custom_call.1} parent=5 // pred_fallthru
        _
    $region6: #{tpu_custom_call.1} parent=1 // loop_footer
      %s31 = sadd.s32 1, %s27
    $region7: #{tpu_custom_call.1} parent=1 // loop_footer_branch
      %26 = sbr.rel target = $region3
    $region8: #{tpu_custom_call.1} parent=1 // loop_exit
      _
    %1097 = vsyncpa [#allocation3], 1
    %s1098 = scalar_lea.sflag [#allocation3], 1
    %1099 = vsyncpa %s1098, 1
    %1100 = vsyncpa [#allocation6], 1
    %s1101 = scalar_lea.sflag [#allocation6], 1
    %1102 = vsyncpa %s1101, 1
    %1103 = vsyncpa [#allocation9], 1
    %1104 = vsyncpa [#allocation4], 1
    %s1105 = scalar_lea.sflag [#allocation4], 1
    %1106 = vsyncpa %s1105, 1
    %1107 = vsyncpa [#allocation13], 1
    %s1108 = scalar_lea.sflag [#allocation13], 1
    %1109 = vsyncpa %s1108, 1

</llo_original>
